<compile_context>
chip_gen: v7x
topology: tpu7x:2x2x1
jax: 0.10.0
libtpu: 0.0.40
codegen_flags: <defaults>
</compile_context>

<pallas_src>
import functools
import math

import jax
import jax.numpy as jnp
from jax.experimental import pallas as pl
from jax.experimental.pallas import tpu as pltpu

_LANE = 128


def _round_up(x, m):
    return ((x + m - 1) // m) * m


def _pad2(a, rows, cols, dtype=None):
    a = jnp.pad(a, ((0, rows - a.shape[0]), (0, cols - a.shape[1])))
    return a if dtype is None else a.astype(dtype)


# ----------------------------- Pallas kernels --------------------------------


def _project_kernel(x_ref, w_ref, o_ref):
    # (TM, F_in) @ (F_in, F_pad) -> (TM, F_pad), f32 accumulate on the MXU,
    # stored bf16 so the bandwidth-bound A_hat @ XW pass streams half the bytes.
    o_ref[...] = jnp.dot(
        x_ref[...], w_ref[...], preferred_element_type=jnp.float32
    ).astype(o_ref.dtype)


def project(x, w, *, tm):
    """Row-tiled X @ W -> bf16 [n_pad, f_pad]; computed once per layer."""
    n_pad, f_in = x.shape
    f_pad = w.shape[1]
    return pl.pallas_call(
        _project_kernel,
        out_shape=jax.ShapeDtypeStruct((n_pad, f_pad), jnp.bfloat16),
        grid_spec=pltpu.PrefetchScalarGridSpec(
            num_scalar_prefetch=0,
            grid=(n_pad // tm,),
            in_specs=[
                pl.BlockSpec((tm, f_in), lambda i: (i, 0)),
                pl.BlockSpec((f_in, f_pad), lambda i: (0, 0)),
            ],
            out_specs=pl.BlockSpec((tm, f_pad), lambda i: (i, 0)),
        ),
        compiler_params=pltpu.CompilerParams(
            dimension_semantics=("parallel",)
        ),
    )(x, w)


def _gcn_spmm_kernel(adj_ref, xw_ref, b_ref, o_ref, acc_ref, *, relu):
    # grid = (rows, K); K is the reduction over adjacency columns.
    k = pl.program_id(1)

    @pl.when(k == 0)
    def _():
        acc_ref[...] = jnp.zeros_like(acc_ref)

    # bf16 x bf16 MXU matmul, f32 accumulation in VMEM scratch.
    acc_ref[...] += jnp.dot(
        adj_ref[...], xw_ref[...], preferred_element_type=jnp.float32
    )

    @pl.when(k == pl.num_programs(1) - 1)
    def _():
        out = acc_ref[...] + b_ref[...]
        if relu:
            out = jnp.maximum(out, 0.0)
        o_ref[...] = out.astype(o_ref.dtype)


def gcn_spmm(adj, xw, b, *, relu, tm, tk):
    """A_hat @ XW + b (optional ReLU): tiled (rows x K) with f32 accumulator."""
    n_pad = adj.shape[0]
    f_pad = xw.shape[1]
    kernel = functools.partial(_gcn_spmm_kernel, relu=relu)
    return pl.pallas_call(
        kernel,
        out_shape=jax.ShapeDtypeStruct((n_pad, f_pad), jnp.float32),
        grid_spec=pltpu.PrefetchScalarGridSpec(
            num_scalar_prefetch=0,
            grid=(n_pad // tm, n_pad // tk),
            in_specs=[
                pl.BlockSpec((tm, tk), lambda i, k: (i, k)),
                pl.BlockSpec((tk, f_pad), lambda i, k: (k, 0)),
                pl.BlockSpec((1, f_pad), lambda i, k: (0, 0)),
            ],
            out_specs=pl.BlockSpec((tm, f_pad), lambda i, k: (i, 0)),
            scratch_shapes=[pltpu.VMEM((tm, f_pad), jnp.float32)],
        ),
        compiler_params=pltpu.CompilerParams(
            dimension_semantics=("parallel", "arbitrary")
        ),
    )(adj, xw, b)


# --------------------------- plain-JAX glue -----------------------------------


def gcn_normalized_adjacency(edge_index, num_nodes):
    """Dense GCN-normalized adjacency: D^-1/2 (A + I) D^-1/2.

    Duplicate edges accumulate (scatter-add, like PyG), and self-loop weights
    are forced to 1.0 (mirrors add_remaining_self_loops with fill_value=1).
    """
    src, dst = edge_index[0], edge_index[1]
    adj = jnp.zeros((num_nodes, num_nodes), jnp.float32)
    adj = adj.at[src, dst].add(1.0)
    diag = jnp.arange(num_nodes)
    adj = adj.at[diag, diag].set(1.0)
    deg = jnp.sum(adj, axis=0)
    d_inv_sqrt = jnp.where(deg > 0, jax.lax.rsqrt(deg), 0.0)
    return adj * d_inv_sqrt[:, None] * d_inv_sqrt[None, :]


def encoder_forward(x, edge_index, params, *, tm=256, tk=256):
    """GAE Encoder forward: relu(GCNConv1(x)) -> GCNConv2 (Pallas hot path)."""
    n, f_in = x.shape
    hidden = params["w1"].shape[1]
    out_ch = params["w2"].shape[1]

    step = math.lcm(tm, tk)
    n_pad = _round_up(n, step)
    h_pad = _round_up(hidden, _LANE)   # lane-dense hidden features
    o_pad = _round_up(out_ch, _LANE)   # lane-dense output features

    # Normalized adjacency: built once, zero-padded, cast to bf16, shared by
    # BOTH layers (it dominates HBM bytes).
    # TODO(synk): for real sparse graphs (Cora etc.), skip zero adjacency
    # blocks via scalar-prefetched block lists instead of a dense A_hat.
    adj = gcn_normalized_adjacency(edge_index, n)
    adj_p = _pad2(adj, n_pad, n_pad, jnp.bfloat16)

    x_p = _pad2(x, n_pad, f_in)
    w1_p = _pad2(params["w1"], f_in, h_pad)
    b1_p = _pad2(params["b1"], 1, h_pad)
    w2_p = _pad2(params["w2"], h_pad, o_pad)
    b2_p = _pad2(params["b2"], 1, o_pad)

    # Layer 1: relu(A_hat @ (X W1) + b1)
    xw1 = project(x_p, w1_p, tm=tm)                            # [n_pad, h_pad] bf16
    h = gcn_spmm(adj_p, xw1, b1_p, relu=True, tm=tm, tk=tk)    # [n_pad, h_pad] f32

    # Layer 2: A_hat @ (H W2) + b2
    xw2 = project(h, w2_p, tm=tm)                              # [n_pad, o_pad] bf16
    z = gcn_spmm(adj_p, xw2, b2_p, relu=False, tm=tm, tk=tk)   # [n_pad, o_pad] f32

    return z[:n, :out_ch]


def init_params(key, in_channels, out_channels):
    hidden = 2 * out_channels
    k1, k2 = jax.random.split(key)

    # Glorot-uniform init (same family as PyG's GCNConv default), deterministic.
    def glorot(k, fan_in, fan_out):
        limit = jnp.sqrt(6.0 / (fan_in + fan_out))
        return jax.random.uniform(
            k, (fan_in, fan_out), jnp.float32, -limit, limit
        )

    return {
        "w1": glorot(k1, in_channels, hidden),
        "b1": jnp.zeros((1, hidden), jnp.float32),
        "w2": glorot(k2, hidden, out_channels),
        "b2": jnp.zeros((1, out_channels), jnp.float32),
    }


if __name__ == "__main__":
    # Small synthetic graph consistent with the module's forward:
    #   x: [num_nodes, in_channels], edge_index: [2, num_edges]
    num_nodes = 300
    in_channels = 16
    out_channels = 8  # hidden = 2 * out_channels = 16

    key = jax.random.PRNGKey(0)
    kx, kp = jax.random.split(key)
    x = jax.random.normal(kx, (num_nodes, in_channels), jnp.float32)

    # Deterministic ring graph (undirected: both directions included).
    src = jnp.arange(num_nodes, dtype=jnp.int32)
    dst = (src + 1) % num_nodes
    edge_index = jnp.stack(
        [jnp.concatenate([src, dst]), jnp.concatenate([dst, src])], axis=0
    )

    params = init_params(kp, in_channels, out_channels)

    # TODO(synk): VGAE branch (conv_mu / conv_logvar) would be two more calls
    # to gcn_spmm(relu=False) on the same h; only the GAE branch is exercised.
    z = encoder_forward(x, edge_index, params)
    jax.block_until_ready(z)
    assert z.shape == (num_nodes, out_channels)
    assert bool(jnp.all(jnp.isfinite(z)))
    print("KERNEL_OK")
</pallas_src>

<mosaic_0001>
module attributes {stable_mosaic.version = 11 : i64} {
  func.func @_project_kernel(%arg0: i32, %arg1: memref<256x16xf32, #tpu.memory_space<vmem>>, %arg2: memref<16x128xf32, #tpu.memory_space<vmem>>, %arg3: memref<256x128xbf16, #tpu.memory_space<vmem>>) attributes {dimension_semantics = [#tpu.dimension_semantics<parallel>], iteration_bounds = array<i64: 2>, scalar_prefetch = 0 : i64, scratch_operands = 0 : i64, tpu.core_type = #tpu.core_type<tc>, window_params = [{transform_indices = @transform_0, window_bounds = array<i64: 256, 16>}, {pipeline_mode = #tpu.pipeline_mode<synchronous>, transform_indices = @transform_1, window_bounds = array<i64: 16, 128>}, {transform_indices = @transform_2, window_bounds = array<i64: 256, 128>}]} {
    %c0 = arith.constant 0 : index
    %c0_0 = arith.constant 0 : index
    %0 = vector.load %arg1[%c0, %c0_0] : memref<256x16xf32, #tpu.memory_space<vmem>>, vector<256x16xf32>
    %c0_1 = arith.constant 0 : index
    %c0_2 = arith.constant 0 : index
    %1 = vector.load %arg2[%c0_1, %c0_2] : memref<16x128xf32, #tpu.memory_space<vmem>>, vector<16x128xf32>
    %cst = arith.constant dense<0.000000e+00> : vector<256x128xf32>
    %2 = tpu.matmul %0, %1, %cst {dimension_numbers = #tpu.dot_dimension_numbers<[1], [0], [0], [1], [0, 0, 1, 1], [], []>} : vector<256x16xf32>, vector<16x128xf32>, vector<256x128xf32> -> vector<256x128xf32>
    %3 = arith.truncf %2 : vector<256x128xf32> to vector<256x128xbf16>
    %c0_3 = arith.constant 0 : index
    %c0_4 = arith.constant 0 : index
    %4 = vector.load %arg3[%c0_3, %c0_4] : memref<256x128xbf16, #tpu.memory_space<vmem>>, vector<256x128xbf16>
    tpu.vector_store %arg3[%c0_3, %c0_4], %3 {strides = array<i32>} : memref<256x128xbf16, #tpu.memory_space<vmem>>, vector<256x128xbf16>,
    return
  }
  func.func @transform_0(%arg0: i32) -> (i32, i32) {
    %c0_i32 = arith.constant 0 : i32
    %c0_i32_0 = arith.constant 0 : i32
    return %arg0, %c0_i32 : i32, i32
  }
  func.func @transform_1(%arg0: i32) -> (i32, i32) {
    %c0_i32 = arith.constant 0 : i32
    %c0_i32_0 = arith.constant 0 : i32
    %c0_i32_1 = arith.constant 0 : i32
    return %c0_i32, %c0_i32_0 : i32, i32
  }
  func.func @transform_2(%arg0: i32) -> (i32, i32) {
    %c0_i32 = arith.constant 0 : i32
    %c0_i32_0 = arith.constant 0 : i32
    return %arg0, %c0_i32 : i32, i32
  }
}

</mosaic_0001>

<llo_original>
// kernel: tpu_custom_call.1
$region0: #{tpu_custom_call.1}
  #allocation0 [shape = 'u32[]', space=smem, size = 0x4, offset = 0x4, fixed_abs, tag = 'smem constant byte address 0x4 - core index']
  #allocation1 [shape = 'u32[144,128]{1,0:T(1,128)}', space=vmem, size = 0x12000, scoped, tag = 'internal scratch']
  %s0 = inlined_call_operand.vmem [shape: f32[512,16], index: 0, kind: input, shape index: {}]
  %s1 = inlined_call_operand.vmem [shape: f32[16,128], index: 1, kind: input, shape index: {}]
  %s2 = inlined_call_operand.hbm [shape: bf16[512,128], index: 2, kind: output, shape index: {}]
  %s3 = sld [smem:[#allocation0]]
  $region41: #{tpu_custom_call.1} parent=0
    _
  %s5 = ssub.s32 1, %s3
  %s6 = scalar_select 0, %s5, %s3
  $region1: #{tpu_custom_call.1} parent=0
    #allocation2 [shape = 'u8[131072]{0}', space=vmem, size = 0x20000, scoped, tag = 'output window, operand 0']
    #allocation3 [shape = 's32[2]{0}', space=sflag, size = 0x8, scoped, tag = 'scoped memory for tpu_custom_call.1']
    %7 = vsyncpa [#allocation3], 0
    %s8 = scalar_lea.sflag [#allocation3], 1
    %9 = vsyncpa %s8, 0
    loop: start=0, step=1, limit=4
    $region2: #{tpu_custom_call.1} parent=1 // loop_pre_header
      _
    $region3: #{tpu_custom_call.1} parent=1 // loop_header
      %s11 = sphi 0, %s15
      %p12 = scmp.ge.s32.totalorder %s11, 4
      %s21 = sphi 0, %s23
      %s24 = sphi 0, %s21
      %s25 = sphi 0, %s24
      %s41 = sphi 0, %s25
      %s45 = sphi 0, %s45
      %s47 = sphi 0, %s45
      %s48 = sphi 0, %s47
      %s62 = sphi 0, %s48
      %s68 = sphi 0, %s70
      %s71 = sphi 0, %s68
      %s72 = sphi 0, %s71
      %s88 = sphi 0, %s72
    $region4: #{tpu_custom_call.1} parent=1 // loop_header_branch
      %14 = sbr.rel (%p12) target = $region8
    $region5: #{tpu_custom_call.1} parent=1 // loop_body
      %s16 = ssub.s32 %s11, 1
      %s17 = ssub.s32 %s11, 2
      %s18 = sadd.s32 %s11, 1
      %s19 = ssub.s32 %s11, %s18
      %p20 = scmp.eq.s32.totalorder %s19, 0
      %s22 = sadd.s32 %s21, 1
      %s23 = scalar_select %p20, %s21, %s22
      %p26 = pneg %p20
      %p27 = scmp.eq.s32.totalorder %s11, 1
      %p28 = por %p26, %p27
      %p29 = scmp.ne.s32.totalorder %s21, %s24
      %p30 = scmp.eq.s32.totalorder %s11, 0
      %p31 = por %p29, %p30
      %p32 = scmp.ne.s32.totalorder %s21, %s24
      %p33 = scmp.eq.s32.totalorder %s16, 1
      %p34 = por %p32, %p33
      %p35 = scmp.ne.s32.totalorder %s24, %s25
      %p36 = scmp.eq.s32.totalorder %s16, 0
      %p37 = por %p35, %p36
      %p38 = scmp.ne.s32.totalorder %s24, %s25
      %p39 = scmp.eq.s32.totalorder %s17, 1
      %p40 = por %p38, %p39
      %p42 = scmp.ne.s32.totalorder %s25, %s41
      %p43 = scmp.eq.s32.totalorder %s17, 0
      %p44 = por %p42, %p43
      %s46 = sadd.s32 %s45, 1
      %p49 = scmp.eq.s32.totalorder %s11, 1
      %p50 = scmp.ne.s32.totalorder %s45, %s47
      %p51 = scmp.eq.s32.totalorder %s11, 0
      %p52 = por %p50, %p51
      %p53 = scmp.ne.s32.totalorder %s45, %s47
      %p54 = scmp.eq.s32.totalorder %s16, 1
      %p55 = por %p53, %p54
      %p56 = scmp.ne.s32.totalorder %s47, %s48
      %p57 = scmp.eq.s32.totalorder %s16, 0
      %p58 = por %p56, %p57
      %p59 = scmp.ne.s32.totalorder %s47, %s48
      %p60 = scmp.eq.s32.totalorder %s17, 1
      %p61 = por %p59, %p60
      %p63 = scmp.ne.s32.totalorder %s48, %s62
      %p64 = scmp.eq.s32.totalorder %s17, 0
      %p65 = por %p63, %p64
      %s66 = ssub.s32 %s11, %s18
      %p67 = scmp.eq.s32.totalorder %s66, 0
      %s69 = sadd.s32 %s68, 1
      %s70 = scalar_select %p67, %s68, %s69
      %p73 = pneg %p67
      %p74 = scmp.eq.s32.totalorder %s11, 1
      %p75 = por %p73, %p74
      %p76 = scmp.ne.s32.totalorder %s68, %s71
      %p77 = scmp.eq.s32.totalorder %s11, 0
      %p78 = por %p76, %p77
      %p79 = scmp.ne.s32.totalorder %s68, %s71
      %p80 = scmp.eq.s32.totalorder %s16, 1
      %p81 = por %p79, %p80
      %p82 = scmp.ne.s32.totalorder %s71, %s72
      %p83 = scmp.eq.s32.totalorder %s16, 0
      %p84 = por %p82, %p83
      %p85 = scmp.ne.s32.totalorder %s71, %s72
      %p86 = scmp.eq.s32.totalorder %s17, 1
      %p87 = por %p85, %p86
      %p89 = scmp.ne.s32.totalorder %s72, %s88
      %p90 = scmp.eq.s32.totalorder %s17, 0
      %p91 = por %p89, %p90
      %p92 = scmp.le.s32.totalorder 1, %s11
      %p93 = scmp.lt.s32.totalorder %s11, 3
      %p94 = pnand %p92, %p93
      %p95 = pneg %p94
      // Predicated region
      $region9: #{tpu_custom_call.1} parent=5 // pred_check
        _
      $region10: #{tpu_custom_call.1} parent=5 // pred_check_branch
        %97 = sbr.rel (%p94) target = $region12
      $region11: #{tpu_custom_call.1} parent=5 // pred_region
        %s98 = ssub.s32 %s11, 1
        // Predicated region
        $region13: #{tpu_custom_call.1} parent=11 // pred_check
          %p99 = pneg %p58
        $region14: #{tpu_custom_call.1} parent=11 // pred_check_branch
          %101 = sbr.rel (%p99) target = $region16
        $region15: #{tpu_custom_call.1} parent=11 // pred_region
          _
        $region16: #{tpu_custom_call.1} parent=11 // pred_fallthru
          _
      $region12: #{tpu_custom_call.1} parent=5 // pred_fallthru
        _
      %p102 = scmp.lt.s32.totalorder %s11, 2
      // Predicated region
      $region17: #{tpu_custom_call.1} parent=5 // pred_check
        %p103 = pneg %p102
      $region18: #{tpu_custom_call.1} parent=5 // pred_check_branch
        %105 = sbr.rel (%p103) target = $region20
      $region19: #{tpu_custom_call.1} parent=5 // pred_region
        // Predicated region
        $region21: #{tpu_custom_call.1} parent=19 // pred_check
          %p106 = pneg %p31
        $region22: #{tpu_custom_call.1} parent=19 // pred_check_branch
          %108 = sbr.rel (%p106) target = $region24
        $region23: #{tpu_custom_call.1} parent=19 // pred_region
          %s109 = smul.u32 32, %s11
          %p110 = scmp.lt.s32.totalorder %s109, 63
          %s111 = scalar_select %p110, %s109, 63
          %s112 = smul.addr %s111, 8
          %s113 = scalar_lea.vmem %s0, %s112
          %s114 = smul.u32 32, %s11
        $region24: #{tpu_custom_call.1} parent=19 // pred_fallthru
          _
      $region20: #{tpu_custom_call.1} parent=5 // pred_fallthru
        _
      %p115 = scmp.le.s32.totalorder 1, %s11
      %p116 = scmp.lt.s32.totalorder %s11, 3
      %p117 = pnand %p115, %p116
      %p118 = pneg %p117
      // Predicated region
      $region25: #{tpu_custom_call.1} parent=5 // pred_check
        _
      $region26: #{tpu_custom_call.1} parent=5 // pred_check_branch
        %120 = sbr.rel (%p117) target = $region28
      $region27: #{tpu_custom_call.1} parent=5 // pred_region
        %s121 = ssub.s32 %s11, 1
        %s122 = smul.u32 32, %s16
        %p123 = scmp.lt.s32.totalorder %s122, 63
        %s124 = scalar_select %p123, %s122, 63
        %s125 = smul.addr %s124, 8
        %s126 = scalar_lea.vmem %s0, %s125
        %p127 = pneg %p37
        %p128 = pneg %p34
        %p129 = pneg %p58
        %p130 = pneg %p55
        %p131 = pneg %p84
        %p132 = pneg %p81
        %s133 = sand.u32 %s71, 1
        %s134 = scalar_lea.sflag [#allocation3], %s133
        %s135 = sand.u32 %s71, 1
        %s136 = smul.addr %s135, 128
        %s137 = scalar_lea.vmem [#allocation2], %s136
        %s138 = smul.u32 32, %s16
        %p139 = scmp.lt.s32.totalorder %s138, 63
        %s140 = scalar_select %p139, %s138, 63
        %s141 = smul.addr %s140, 8
        %s142 = scalar_lea.vmem %s0, %s141
        %s143 = smul.u32 32, %s16
        %s144 = smul.u32 32, %s16
        %v145 = vld [vmem:[%s142] sm:$0xff]
        %v146 = vld [vmem:[%s142 + $0x8] sm:$0xff]
        %v147 = vld [vmem:[%s142 + $0x10] sm:$0xff]
        %v148 = vld [vmem:[%s142 + $0x18] sm:$0xff]
        %v149 = vld [vmem:[%s142 + $0x20] sm:$0xff]
        %v150 = vld [vmem:[%s142 + $0x28] sm:$0xff]
        %v151 = vld [vmem:[%s142 + $0x30] sm:$0xff]
        %v152 = vld [vmem:[%s142 + $0x38] sm:$0xff]
        %v153 = vld [vmem:[%s142 + $0x40] sm:$0xff]
        %v154 = vld [vmem:[%s142 + $0x48] sm:$0xff]
        %v155 = vld [vmem:[%s142 + $0x50] sm:$0xff]
        %v156 = vld [vmem:[%s142 + $0x58] sm:$0xff]
        %v157 = vld [vmem:[%s142 + $0x60] sm:$0xff]
        %v158 = vld [vmem:[%s142 + $0x68] sm:$0xff]
        %v159 = vld [vmem:[%s142 + $0x70] sm:$0xff]
        %v160 = vld [vmem:[%s142 + $0x78] sm:$0xff]
        %v161 = vld [vmem:[%s142 + $0x80] sm:$0xff]
        %v162 = vld [vmem:[%s142 + $0x88] sm:$0xff]
        %v163 = vld [vmem:[%s142 + $0x90] sm:$0xff]
        %v164 = vld [vmem:[%s142 + $0x98] sm:$0xff]
        %v165 = vld [vmem:[%s142 + $0xa0] sm:$0xff]
        %v166 = vld [vmem:[%s142 + $0xa8] sm:$0xff]
        %v167 = vld [vmem:[%s142 + $0xb0] sm:$0xff]
        %v168 = vld [vmem:[%s142 + $0xb8] sm:$0xff]
        %v169 = vld [vmem:[%s142 + $0xc0] sm:$0xff]
        %v170 = vld [vmem:[%s142 + $0xc8] sm:$0xff]
        %v171 = vld [vmem:[%s142 + $0xd0] sm:$0xff]
        %v172 = vld [vmem:[%s142 + $0xd8] sm:$0xff]
        %v173 = vld [vmem:[%s142 + $0xe0] sm:$0xff]
        %v174 = vld [vmem:[%s142 + $0xe8] sm:$0xff]
        %v175 = vld [vmem:[%s142 + $0xf0] sm:$0xff]
        %v176 = vld [vmem:[%s142 + $0xf8] sm:$0xff]
        %v177 = vld [vmem:[%s1] sm:$0xff]
        %v178 = vld [vmem:[%s1 + $0x8] sm:$0xff]
        %vm179 = vcmask 130048
        %v181 = vsel %vm179, %v145, 0
        %v184 = vsel %vm179, %v146, 0
        %v187 = vsel %vm179, %v147, 0
        %v190 = vsel %vm179, %v148, 0
        %v193 = vsel %vm179, %v149, 0
        %v196 = vsel %vm179, %v150, 0
        %v199 = vsel %vm179, %v151, 0
        %v202 = vsel %vm179, %v152, 0
        %v205 = vsel %vm179, %v153, 0
        %v208 = vsel %vm179, %v154, 0
        %v211 = vsel %vm179, %v155, 0
        %v214 = vsel %vm179, %v156, 0
        %v217 = vsel %vm179, %v157, 0
        %v220 = vsel %vm179, %v158, 0
        %v223 = vsel %vm179, %v159, 0
        %v226 = vsel %vm179, %v160, 0
        %v229 = vsel %vm179, %v161, 0
        %v232 = vsel %vm179, %v162, 0
        %v235 = vsel %vm179, %v163, 0
        %v238 = vsel %vm179, %v164, 0
        %v241 = vsel %vm179, %v165, 0
        %v244 = vsel %vm179, %v166, 0
        %v247 = vsel %vm179, %v167, 0
        %v250 = vsel %vm179, %v168, 0
        %v253 = vsel %vm179, %v169, 0
        %v256 = vsel %vm179, %v170, 0
        %v259 = vsel %vm179, %v171, 0
        %v262 = vsel %vm179, %v172, 0
        %v265 = vsel %vm179, %v173, 0
        %v268 = vsel %vm179, %v174, 0
        %v271 = vsel %vm179, %v175, 0
        %v274 = vsel %vm179, %v176, 0
        %276 = vmatprep.subr.mxu0 0.0
        %277 = vmatpush1.msra.mxu0 %v177
        %278 = vmatprep.subr.mxu0 0.0
        %279 = vmatpush1.msra.mxu0 %v178
        %280 = vmatprep.subr.mxu0 0.0
        %281 = vmatpush1.msra.mxu0 0.0
        %282 = vmatprep.subr.mxu0 0.0
        %283 = vmatpush1.msra.mxu0 0.0
        %284 = vmatprep.subr.mxu0 0.0
        %285 = vmatpush1.msra.mxu0 0.0
        %286 = vmatprep.subr.mxu0 0.0
        %287 = vmatpush1.msra.mxu0 0.0
        %288 = vmatprep.subr.mxu0 0.0
        %289 = vmatpush1.msra.mxu0 0.0
        %290 = vmatprep.subr.mxu0 0.0
        %291 = vmatpush1.msra.mxu0 0.0
        %292 = vmatprep.subr.mxu0 0.0
        %293 = vmatpush1.msra.mxu0 0.0
        %294 = vmatprep.subr.mxu0 0.0
        %295 = vmatpush1.msra.mxu0 0.0
        %296 = vmatprep.subr.mxu0 0.0
        %297 = vmatpush1.msra.mxu0 0.0
        %298 = vmatprep.subr.mxu0 0.0
        %299 = vmatpush1.msra.mxu0 0.0
        %300 = vmatprep.subr.mxu0 0.0
        %301 = vmatpush1.msra.mxu0 0.0
        %302 = vmatprep.subr.mxu0 0.0
        %303 = vmatpush1.msra.mxu0 0.0
        %304 = vmatprep.subr.mxu0 0.0
        %305 = vmatpush1.msra.mxu0 0.0
        %306 = vmatprep.subr.mxu0 0.0
        %307 = vmatpush1.msra.mxu0 0.0
        %308 = vmatprep.subr.mxu0 0.0
        %309 = vmatpush1.msra.mxu0 0.0
        %310 = vmatprep.subr.mxu0 0.0
        %311 = vmatpush1.msra.mxu0 0.0
        %312 = vmatprep.subr.mxu0 0.0
        %313 = vmatpush1.msra.mxu0 0.0
        %314 = vmatprep.subr.mxu0 0.0
        %315 = vmatpush1.msra.mxu0 0.0
        %316 = vmatprep.subr.mxu0 0.0
        %317 = vmatpush1.msra.mxu0 0.0
        %318 = vmatprep.subr.mxu0 0.0
        %319 = vmatpush1.msra.mxu0 0.0
        %320 = vmatprep.subr.mxu0 0.0
        %321 = vmatpush1.msra.mxu0 0.0
        %322 = vmatprep.subr.mxu0 0.0
        %323 = vmatpush1.msra.mxu0 0.0
        %324 = vmatprep.subr.mxu0 0.0
        %325 = vmatpush1.msra.mxu0 0.0
        %326 = vmatprep.subr.mxu0 0.0
        %327 = vmatpush1.msra.mxu0 0.0
        %328 = vmatprep.subr.mxu0 0.0
        %329 = vmatpush1.msra.mxu0 0.0
        %330 = vmatprep.subr.mxu0 0.0
        %331 = vmatpush1.msra.mxu0 0.0
        %332 = vmatprep.subr.mxu0 0.0
        %333 = vmatpush1.msra.mxu0 0.0
        %334 = vmatprep.subr.mxu0 0.0
        %335 = vmatpush1.msra.mxu0 0.0
        %336 = vmatprep.subr.mxu0 0.0
        %337 = vmatpush1.msra.mxu0 0.0
        %338 = vmatprep.subr.mxu0 0.0
        %339 = vmatpush1.msra.mxu0 0.0
        %340 = vmatprep.mubr.f32.mxu0 0.0
        %341 = vmatmul.mubr.f32.gmra.mrb[0].mxu0 %v181
        %v342 = vpop.f32.mrb[0].mxu0
        %v343 = vadd.f32 0.0, %v342
        %v344 = vpop.f32.mrb[0].mxu0
        %345 = vmatprep.mubr.f32.mxu0 0.0
        %346 = vmatmul.mubr.f32.gmra.mrb[0].mxu0 %v184
        %v347 = vpop.f32.mrb[0].mxu0
        %v348 = vadd.f32 0.0, %v347
        %v349 = vpop.f32.mrb[0].mxu0
        %350 = vmatprep.mubr.f32.mxu0 0.0
        %351 = vmatmul.mubr.f32.gmra.mrb[0].mxu0 %v187
        %v352 = vpop.f32.mrb[0].mxu0
        %v353 = vadd.f32 0.0, %v352
        %v354 = vpop.f32.mrb[0].mxu0
        %355 = vmatprep.mubr.f32.mxu0 0.0
        %356 = vmatmul.mubr.f32.gmra.mrb[0].mxu0 %v190
        %v357 = vpop.f32.mrb[0].mxu0
        %v358 = vadd.f32 0.0, %v357
        %v359 = vpop.f32.mrb[0].mxu0
        %360 = vmatprep.mubr.f32.mxu0 0.0
        %361 = vmatmul.mubr.f32.gmra.mrb[0].mxu0 %v193
        %v362 = vpop.f32.mrb[0].mxu0
        %v363 = vadd.f32 0.0, %v362
        %v364 = vpop.f32.mrb[0].mxu0
        %365 = vmatprep.mubr.f32.mxu0 0.0
        %366 = vmatmul.mubr.f32.gmra.mrb[0].mxu0 %v196
        %v367 = vpop.f32.mrb[0].mxu0
        %v368 = vadd.f32 0.0, %v367
        %v369 = vpop.f32.mrb[0].mxu0
        %370 = vmatprep.mubr.f32.mxu0 0.0
        %371 = vmatmul.mubr.f32.gmra.mrb[0].mxu0 %v199
        %v372 = vpop.f32.mrb[0].mxu0
        %v373 = vadd.f32 0.0, %v372
        %v374 = vpop.f32.mrb[0].mxu0
        %375 = vmatprep.mubr.f32.mxu0 0.0
        %376 = vmatmul.mubr.f32.gmra.mrb[0].mxu0 %v202
        %v377 = vpop.f32.mrb[0].mxu0
        %v378 = vadd.f32 0.0, %v377
        %v379 = vpop.f32.mrb[0].mxu0
        %380 = vmatprep.mubr.f32.mxu0 0.0
        %381 = vmatmul.mubr.f32.gmra.mrb[0].mxu0 %v205
        %v382 = vpop.f32.mrb[0].mxu0
        %v383 = vadd.f32 0.0, %v382
        %v384 = vpop.f32.mrb[0].mxu0
        %385 = vmatprep.mubr.f32.mxu0 0.0
        %386 = vmatmul.mubr.f32.gmra.mrb[0].mxu0 %v208
        %v387 = vpop.f32.mrb[0].mxu0
        %v388 = vadd.f32 0.0, %v387
        %v389 = vpop.f32.mrb[0].mxu0
        %390 = vmatprep.mubr.f32.mxu0 0.0
        %391 = vmatmul.mubr.f32.gmra.mrb[0].mxu0 %v211
        %v392 = vpop.f32.mrb[0].mxu0
        %v393 = vadd.f32 0.0, %v392
        %v394 = vpop.f32.mrb[0].mxu0
        %395 = vmatprep.mubr.f32.mxu0 0.0
        %396 = vmatmul.mubr.f32.gmra.mrb[0].mxu0 %v214
        %v397 = vpop.f32.mrb[0].mxu0
        %v398 = vadd.f32 0.0, %v397
        %v399 = vpop.f32.mrb[0].mxu0
        %400 = vmatprep.mubr.f32.mxu0 0.0
        %401 = vmatmul.mubr.f32.gmra.mrb[0].mxu0 %v217
        %v402 = vpop.f32.mrb[0].mxu0
        %v403 = vadd.f32 0.0, %v402
        %v404 = vpop.f32.mrb[0].mxu0
        %405 = vmatprep.mubr.f32.mxu0 0.0
        %406 = vmatmul.mubr.f32.gmra.mrb[0].mxu0 %v220
        %v407 = vpop.f32.mrb[0].mxu0
        %v408 = vadd.f32 0.0, %v407
        %v409 = vpop.f32.mrb[0].mxu0
        %410 = vmatprep.mubr.f32.mxu0 0.0
        %411 = vmatmul.mubr.f32.gmra.mrb[0].mxu0 %v223
        %v412 = vpop.f32.mrb[0].mxu0
        %v413 = vadd.f32 0.0, %v412
        %v414 = vpop.f32.mrb[0].mxu0
        %415 = vmatprep.mubr.f32.mxu0 0.0
        %416 = vmatmul.mubr.f32.gmra.mrb[0].mxu0 %v226
        %v417 = vpop.f32.mrb[0].mxu0
        %v418 = vadd.f32 0.0, %v417
        %v419 = vpop.f32.mrb[0].mxu0
        %420 = vmatprep.mubr.f32.mxu0 0.0
        %421 = vmatmul.mubr.f32.gmra.mrb[0].mxu0 %v229
        %v422 = vpop.f32.mrb[0].mxu0
        %v423 = vadd.f32 0.0, %v422
        %v424 = vpop.f32.mrb[0].mxu0
        %425 = vmatprep.mubr.f32.mxu0 0.0
        %426 = vmatmul.mubr.f32.gmra.mrb[0].mxu0 %v232
        %v427 = vpop.f32.mrb[0].mxu0
        %v428 = vadd.f32 0.0, %v427
        %v429 = vpop.f32.mrb[0].mxu0
        %430 = vmatprep.mubr.f32.mxu0 0.0
        %431 = vmatmul.mubr.f32.gmra.mrb[0].mxu0 %v235
        %v432 = vpop.f32.mrb[0].mxu0
        %v433 = vadd.f32 0.0, %v432
        %v434 = vpop.f32.mrb[0].mxu0
        %435 = vmatprep.mubr.f32.mxu0 0.0
        %436 = vmatmul.mubr.f32.gmra.mrb[0].mxu0 %v238
        %v437 = vpop.f32.mrb[0].mxu0
        %v438 = vadd.f32 0.0, %v437
        %v439 = vpop.f32.mrb[0].mxu0
        %440 = vmatprep.mubr.f32.mxu0 0.0
        %441 = vmatmul.mubr.f32.gmra.mrb[0].mxu0 %v241
        %v442 = vpop.f32.mrb[0].mxu0
        %v443 = vadd.f32 0.0, %v442
        %v444 = vpop.f32.mrb[0].mxu0
        %445 = vmatprep.mubr.f32.mxu0 0.0
        %446 = vmatmul.mubr.f32.gmra.mrb[0].mxu0 %v244
        %v447 = vpop.f32.mrb[0].mxu0
        %v448 = vadd.f32 0.0, %v447
        %v449 = vpop.f32.mrb[0].mxu0
        %450 = vmatprep.mubr.f32.mxu0 0.0
        %451 = vmatmul.mubr.f32.gmra.mrb[0].mxu0 %v247
        %v452 = vpop.f32.mrb[0].mxu0
        %v453 = vadd.f32 0.0, %v452
        %v454 = vpop.f32.mrb[0].mxu0
        %455 = vmatprep.mubr.f32.mxu0 0.0
        %456 = vmatmul.mubr.f32.gmra.mrb[0].mxu0 %v250
        %v457 = vpop.f32.mrb[0].mxu0
        %v458 = vadd.f32 0.0, %v457
        %v459 = vpop.f32.mrb[0].mxu0
        %460 = vmatprep.mubr.f32.mxu0 0.0
        %461 = vmatmul.mubr.f32.gmra.mrb[0].mxu0 %v253
        %v462 = vpop.f32.mrb[0].mxu0
        %v463 = vadd.f32 0.0, %v462
        %v464 = vpop.f32.mrb[0].mxu0
        %465 = vmatprep.mubr.f32.mxu0 0.0
        %466 = vmatmul.mubr.f32.gmra.mrb[0].mxu0 %v256
        %v467 = vpop.f32.mrb[0].mxu0
        %v468 = vadd.f32 0.0, %v467
        %v469 = vpop.f32.mrb[0].mxu0
        %470 = vmatprep.mubr.f32.mxu0 0.0
        %471 = vmatmul.mubr.f32.gmra.mrb[0].mxu0 %v259
        %v472 = vpop.f32.mrb[0].mxu0
        %v473 = vadd.f32 0.0, %v472
        %v474 = vpop.f32.mrb[0].mxu0
        %475 = vmatprep.mubr.f32.mxu0 0.0
        %476 = vmatmul.mubr.f32.gmra.mrb[0].mxu0 %v262
        %v477 = vpop.f32.mrb[0].mxu0
        %v478 = vadd.f32 0.0, %v477
        %v479 = vpop.f32.mrb[0].mxu0
        %480 = vmatprep.mubr.f32.mxu0 0.0
        %481 = vmatmul.mubr.f32.gmra.mrb[0].mxu0 %v265
        %v482 = vpop.f32.mrb[0].mxu0
        %v483 = vadd.f32 0.0, %v482
        %v484 = vpop.f32.mrb[0].mxu0
        %485 = vmatprep.mubr.f32.mxu0 0.0
        %486 = vmatmul.mubr.f32.gmra.mrb[0].mxu0 %v268
        %v487 = vpop.f32.mrb[0].mxu0
        %v488 = vadd.f32 0.0, %v487
        %v489 = vpop.f32.mrb[0].mxu0
        %490 = vmatprep.mubr.f32.mxu0 0.0
        %491 = vmatmul.mubr.f32.gmra.mrb[0].mxu0 %v271
        %v492 = vpop.f32.mrb[0].mxu0
        %v493 = vadd.f32 0.0, %v492
        %v494 = vpop.f32.mrb[0].mxu0
        %495 = vmatprep.mubr.f32.mxu0 0.0
        %496 = vmatmul.mubr.f32.gmra.mrb[0].mxu0 %v274
        %v497 = vpop.f32.mrb[0].mxu0
        %v498 = vadd.f32 0.0, %v497
        %v499 = vpop.f32.mrb[0].mxu0
        %500 = vdwg.mxu0
        %v501 = vpack.c.bf16 %v348, %v343
        %v502 = vpack.c.bf16 %v358, %v353
        %v503 = vpack.c.bf16 %v368, %v363
        %v504 = vpack.c.bf16 %v378, %v373
        %v505 = vpack.c.bf16 %v388, %v383
        %v506 = vpack.c.bf16 %v398, %v393
        %v507 = vpack.c.bf16 %v408, %v403
        %v508 = vpack.c.bf16 %v418, %v413
        %v509 = vpack.c.bf16 %v428, %v423
        %v510 = vpack.c.bf16 %v438, %v433
        %v511 = vpack.c.bf16 %v448, %v443
        %v512 = vpack.c.bf16 %v458, %v453
        %v513 = vpack.c.bf16 %v468, %v463
        %v514 = vpack.c.bf16 %v478, %v473
        %v515 = vpack.c.bf16 %v488, %v483
        %v516 = vpack.c.bf16 %v498, %v493
        %v533 = vunpack.c.l.b16 %v501
        %v534 = vunpack.c.h.b16 %v501
        %v535 = vunpack.c.l.b16 %v502
        %v536 = vunpack.c.h.b16 %v502
        %v537 = vunpack.c.l.b16 %v503
        %v538 = vunpack.c.h.b16 %v503
        %v539 = vunpack.c.l.b16 %v504
        %v540 = vunpack.c.h.b16 %v504
        %v541 = vunpack.c.l.b16 %v505
        %v542 = vunpack.c.h.b16 %v505
        %v543 = vunpack.c.l.b16 %v506
        %v544 = vunpack.c.h.b16 %v506
        %v545 = vunpack.c.l.b16 %v507
        %v546 = vunpack.c.h.b16 %v507
        %v547 = vunpack.c.l.b16 %v508
        %v548 = vunpack.c.h.b16 %v508
        %v549 = vunpack.c.l.b16 %v509
        %v550 = vunpack.c.h.b16 %v509
        %v551 = vunpack.c.l.b16 %v510
        %v552 = vunpack.c.h.b16 %v510
        %v553 = vunpack.c.l.b16 %v511
        %v554 = vunpack.c.h.b16 %v511
        %v555 = vunpack.c.l.b16 %v512
        %v556 = vunpack.c.h.b16 %v512
        %v557 = vunpack.c.l.b16 %v513
        %v558 = vunpack.c.h.b16 %v513
        %v559 = vunpack.c.l.b16 %v514
        %v560 = vunpack.c.h.b16 %v514
        %v561 = vunpack.c.l.b16 %v515
        %v562 = vunpack.c.h.b16 %v515
        %v563 = vunpack.c.l.b16 %v516
        %v564 = vunpack.c.h.b16 %v516
        %v565 = vpack.c.b16 %v533, %v533
        %v566 = vpack.c.b16 %v534, %v534
        %v567 = vpack.c.b16 %v535, %v535
        %v568 = vpack.c.b16 %v536, %v536
        %v569 = vpack.c.b16 %v537, %v537
        %v570 = vpack.c.b16 %v538, %v538
        %v571 = vpack.c.b16 %v539, %v539
        %v572 = vpack.c.b16 %v540, %v540
        %v573 = vpack.c.b16 %v541, %v541
        %v574 = vpack.c.b16 %v542, %v542
        %v575 = vpack.c.b16 %v543, %v543
        %v576 = vpack.c.b16 %v544, %v544
        %v577 = vpack.c.b16 %v545, %v545
        %v578 = vpack.c.b16 %v546, %v546
        %v579 = vpack.c.b16 %v547, %v547
        %v580 = vpack.c.b16 %v548, %v548
        %v581 = vpack.c.b16 %v549, %v549
        %v582 = vpack.c.b16 %v550, %v550
        %v583 = vpack.c.b16 %v551, %v551
        %v584 = vpack.c.b16 %v552, %v552
        %v585 = vpack.c.b16 %v553, %v553
        %v586 = vpack.c.b16 %v554, %v554
        %v587 = vpack.c.b16 %v555, %v555
        %v588 = vpack.c.b16 %v556, %v556
        %v589 = vpack.c.b16 %v557, %v557
        %v590 = vpack.c.b16 %v558, %v558
        %v591 = vpack.c.b16 %v559, %v559
        %v592 = vpack.c.b16 %v560, %v560
        %v593 = vpack.c.b16 %v561, %v561
        %v594 = vpack.c.b16 %v562, %v562
        %v595 = vpack.c.b16 %v563, %v563
        %v596 = vpack.c.b16 %v564, %v564
        %629 = vst [vmem:[%s137] sm:$0xf] %v565
        %630 = vst [vmem:[%s137 + $0x4] sm:$0xf] %v566
        %631 = vst [vmem:[%s137 + $0x8] sm:$0xf] %v567
        %632 = vst [vmem:[%s137 + $0xc] sm:$0xf] %v568
        %633 = vst [vmem:[%s137 + $0x10] sm:$0xf] %v569
        %634 = vst [vmem:[%s137 + $0x14] sm:$0xf] %v570
        %635 = vst [vmem:[%s137 + $0x18] sm:$0xf] %v571
        %636 = vst [vmem:[%s137 + $0x1c] sm:$0xf] %v572
        %637 = vst [vmem:[%s137 + $0x20] sm:$0xf] %v573
        %638 = vst [vmem:[%s137 + $0x24] sm:$0xf] %v574
        %639 = vst [vmem:[%s137 + $0x28] sm:$0xf] %v575
        %640 = vst [vmem:[%s137 + $0x2c] sm:$0xf] %v576
        %641 = vst [vmem:[%s137 + $0x30] sm:$0xf] %v577
        %642 = vst [vmem:[%s137 + $0x34] sm:$0xf] %v578
        %643 = vst [vmem:[%s137 + $0x38] sm:$0xf] %v579
        %644 = vst [vmem:[%s137 + $0x3c] sm:$0xf] %v580
        %645 = vst [vmem:[%s137 + $0x40] sm:$0xf] %v581
        %646 = vst [vmem:[%s137 + $0x44] sm:$0xf] %v582
        %647 = vst [vmem:[%s137 + $0x48] sm:$0xf] %v583
        %648 = vst [vmem:[%s137 + $0x4c] sm:$0xf] %v584
        %649 = vst [vmem:[%s137 + $0x50] sm:$0xf] %v585
        %650 = vst [vmem:[%s137 + $0x54] sm:$0xf] %v586
        %651 = vst [vmem:[%s137 + $0x58] sm:$0xf] %v587
        %652 = vst [vmem:[%s137 + $0x5c] sm:$0xf] %v588
        %653 = vst [vmem:[%s137 + $0x60] sm:$0xf] %v589
        %654 = vst [vmem:[%s137 + $0x64] sm:$0xf] %v590
        %655 = vst [vmem:[%s137 + $0x68] sm:$0xf] %v591
        %656 = vst [vmem:[%s137 + $0x6c] sm:$0xf] %v592
        %657 = vst [vmem:[%s137 + $0x70] sm:$0xf] %v593
        %658 = vst [vmem:[%s137 + $0x74] sm:$0xf] %v594
        %659 = vst [vmem:[%s137 + $0x78] sm:$0xf] %v595
        %660 = vst [vmem:[%s137 + $0x7c] sm:$0xf] %v596
        %s661 = sand.u32 %s71, 1
        %s662 = scalar_lea.sflag [#allocation3], %s661
        %s663 = sand.u32 %s71, 1
        %s664 = smul.addr %s663, 128
        %s665 = scalar_lea.vmem [#allocation2], %s664
        // Predicated region
        $region29: #{tpu_custom_call.1} parent=27 // pred_check
          %p666 = pneg %p81
        $region30: #{tpu_custom_call.1} parent=27 // pred_check_branch
          %668 = sbr.rel (%p666) target = $region32
        $region31: #{tpu_custom_call.1} parent=27 // pred_region
          %s669 = smul.u32 32, %s16
          %s671 = ssub.s32 2048, 2048
          %672 = vsyncadd %s662, %s671
          %s673 = smul.addr %s669, 64
          %s674 = scalar_lea.hbm %s2, %s673
          %s675 = sshll.u32 %s665, 4
          %s676 = int_to_ptr.vmem [resolvable:$true] %s675
          %681 = dma.vmem_to_hbm [thread:$0]  %s676, 2048, %s674, %s662, 64, 64, 4
        $region32: #{tpu_custom_call.1} parent=27 // pred_fallthru
          _
      $region28: #{tpu_custom_call.1} parent=5 // pred_fallthru
        _
      %p682 = scmp.le.s32.totalorder 2, %s11
      // Predicated region
      $region33: #{tpu_custom_call.1} parent=5 // pred_check
        %p683 = pneg %p682
      $region34: #{tpu_custom_call.1} parent=5 // pred_check_branch
        %685 = sbr.rel (%p683) target = $region36
      $region35: #{tpu_custom_call.1} parent=5 // pred_region
        %s686 = ssub.s32 %s11, 2
        // Predicated region
        $region37: #{tpu_custom_call.1} parent=35 // pred_check
          %p687 = pneg %p87
        $region38: #{tpu_custom_call.1} parent=35 // pred_check_branch
          %689 = sbr.rel (%p687) target = $region40
        $region39: #{tpu_custom_call.1} parent=35 // pred_region
          %s690 = sand.u32 %s72, 1
          %s691 = scalar_lea.sflag [#allocation3], %s690
          %s692 = sand.u32 %s72, 1
          %s693 = smul.addr %s692, 128
          %s694 = scalar_lea.vmem [#allocation2], %s693
          %695 = dma.done %s691, 2048
        $region40: #{tpu_custom_call.1} parent=35 // pred_fallthru
          _
      $region36: #{tpu_custom_call.1} parent=5 // pred_fallthru
        _
    $region6: #{tpu_custom_call.1} parent=1 // loop_footer
      %s15 = sadd.s32 1, %s11
    $region7: #{tpu_custom_call.1} parent=1 // loop_footer_branch
      %10 = sbr.rel target = $region3
    $region8: #{tpu_custom_call.1} parent=1 // loop_exit
      _
    %696 = vsyncpa [#allocation3], 1
    %s697 = scalar_lea.sflag [#allocation3], 1
    %698 = vsyncpa %s697, 1

</llo_original>
